<compile_context>
chip_gen: v5e
topology: v5e:2x2
jax: 0.10.0
libtpu: 0.0.40
codegen_flags: <defaults>
</compile_context>

<pallas_src>
import functools

import jax
import jax.numpy as jnp
from jax.experimental import pallas as pl
from jax.experimental.pallas import tpu as pltpu

_LANE = 128


# ----------------------------- Pallas kernel ------------------------------- #

def _gcn_fused_kernel(a_ref, x_ref, w1_ref, b1_ref, w2_ref, b2_ref,
                      wc_ref, bc_ref, o_ref, *, inv_n):
    """Fused GCN forward: 2x GraphConv + ReLU + mean readout + classifier."""
    # f32 operands are cast to bf16 on the VPU here, under the MXU, so the
    # wrapper never writes a bf16 copy of A_hat / X back to HBM.
    a_bf = a_ref[...].astype(jnp.bfloat16)

    # ---- GraphConv 1 + ReLU:  h1 = relu(A_hat @ (X @ W1) + b1)
    xw = jnp.dot(x_ref[...].astype(jnp.bfloat16),
                 w1_ref[...].astype(jnp.bfloat16),
                 preferred_element_type=jnp.float32).astype(jnp.bfloat16)
    h1 = jnp.dot(a_bf, xw, preferred_element_type=jnp.float32) + b1_ref[...]
    h1 = jnp.maximum(h1, 0.0).astype(jnp.bfloat16)   # kernel-local; no VMEM scratch

    # ---- GraphConv 2:  h2 = A_hat @ (h1 @ W2) + b2
    hw = jnp.dot(h1, w2_ref[...].astype(jnp.bfloat16),
                 preferred_element_type=jnp.float32).astype(jnp.bfloat16)
    h2 = jnp.dot(a_bf, hw, preferred_element_type=jnp.float32) + b2_ref[...]

    # ---- mean_nodes: cross-sublane sum on the XLU (mean-row input removed).
    hg = jnp.sum(h2, axis=0, keepdims=True) * inv_n            # (1, H_PAD) f32

    # ---- Linear classifier, lane-dense (128) padded output.
    logits = jnp.dot(hg.astype(jnp.bfloat16),
                     wc_ref[...].astype(jnp.bfloat16),
                     preferred_element_type=jnp.float32)
    o_ref[...] = (logits + bc_ref[...]).astype(o_ref.dtype)


# ------------------------------ JAX wrapper -------------------------------- #

def _round_up(v, m):
    return ((v + m - 1) // m) * m


def _pad_to(x, shape):
    return jnp.pad(x, [(0, t - s) for s, t in zip(x.shape, shape)])


def _full_spec(shape):
    return pl.BlockSpec(shape, lambda: (0,) * len(shape))


def gcn_forward(a_hat, in_feat, params):
    n, in_dim = in_feat.shape
    hidden = params["w1"].shape[1]
    n_classes = params["wc"].shape[1]
    h_pad = _round_up(hidden, _LANE)
    c_pad = _round_up(n_classes, _LANE)

    # Zero-pad hidden/class lane dims to 128: every MXU pass is full width and
    # the output store is an unmasked vst; padding is mathematically exact.
    # TODO(synk): for a real model, pad the parameters once at init, not per call.
    w1 = _pad_to(params["w1"], (in_dim, h_pad))
    b1 = _pad_to(params["b1"], (1, h_pad))
    w2 = _pad_to(params["w2"], (h_pad, h_pad))
    b2 = _pad_to(params["b2"], (1, h_pad))
    wc = _pad_to(params["wc"], (h_pad, c_pad))
    bc = _pad_to(params["bc"], (1, c_pad))

    flops = 2 * (n * in_dim * h_pad        # X @ W1
                 + n * n * h_pad           # A_hat @ (X W1)
                 + n * h_pad * h_pad       # h1 @ W2
                 + n * n * h_pad           # A_hat @ (h1 W2)
                 + h_pad * c_pad)          # classifier
    bytes_accessed = 4 * (n * n + n * in_dim + in_dim * h_pad + h_pad
                          + h_pad * h_pad + h_pad + h_pad * c_pad + c_pad
                          + c_pad)

    out = pl.pallas_call(
        functools.partial(_gcn_fused_kernel, inv_n=1.0 / n),
        out_shape=jax.ShapeDtypeStruct((1, c_pad), jnp.float32),
        in_specs=[
            _full_spec((n, n)),            # A_hat (f32, cast to bf16 in-kernel)
            _full_spec((n, in_dim)),       # X
            _full_spec((in_dim, h_pad)),   # W1
            _full_spec((1, h_pad)),        # b1
            _full_spec((h_pad, h_pad)),    # W2
            _full_spec((1, h_pad)),        # b2
            _full_spec((h_pad, c_pad)),    # Wc
            _full_spec((1, c_pad)),        # bc
        ],
        out_specs=_full_spec((1, c_pad)),
        cost_estimate=pl.CostEstimate(flops=flops, transcendentals=0,
                                      bytes_accessed=bytes_accessed),
        compiler_params=pltpu.CompilerParams(vmem_limit_bytes=32 * 1024 * 1024),
    )(a_hat, in_feat, w1, b1, w2, b2, wc, bc)

    return out[:, :n_classes]


# --------------------------------- main ------------------------------------ #

def _glorot(key, shape):
    fan_in, fan_out = shape
    limit = jnp.sqrt(6.0 / (fan_in + fan_out))
    return jax.random.uniform(key, shape, jnp.float32, -limit, limit)


def _ref_forward(a_hat, in_feat, params):
    """Pure-JAX reference with the same bf16 operand casts / f32 accumulation."""
    a_bf = a_hat.astype(jnp.bfloat16)
    xw = jnp.dot(in_feat.astype(jnp.bfloat16), params["w1"].astype(jnp.bfloat16),
                 preferred_element_type=jnp.float32).astype(jnp.bfloat16)
    h1 = jnp.maximum(
        jnp.dot(a_bf, xw, preferred_element_type=jnp.float32) + params["b1"], 0.0
    ).astype(jnp.bfloat16)
    hw = jnp.dot(h1, params["w2"].astype(jnp.bfloat16),
                 preferred_element_type=jnp.float32).astype(jnp.bfloat16)
    h2 = jnp.dot(a_bf, hw, preferred_element_type=jnp.float32) + params["b2"]
    hg = jnp.mean(h2, axis=0, keepdims=True)
    return (jnp.dot(hg.astype(jnp.bfloat16), params["wc"].astype(jnp.bfloat16),
                    preferred_element_type=jnp.float32) + params["bc"])


if __name__ == "__main__":
    N = 16          # nodes in the (single) graph
    IN_DIM = 8
    HIDDEN = 32
    N_CLASSES = 4

    root = jax.random.PRNGKey(0)
    k_adj, k_feat, k1, k2, k3, k4 = jax.random.split(root, 6)

    # Deterministic random undirected graph with self-loops (so degrees > 0).
    upper = (jax.random.uniform(k_adj, (N, N)) > 0.7).astype(jnp.float32)
    adj = jnp.triu(upper, 1)
    adj = adj + adj.T + jnp.eye(N, dtype=jnp.float32)

    # Symmetric normalization (DGL GraphConv norm='both'): A_hat = D^-1/2 A D^-1/2
    deg = jnp.sum(adj, axis=1)
    d_inv_sqrt = 1.0 / jnp.sqrt(deg)
    a_hat = adj * d_inv_sqrt[:, None] * d_inv_sqrt[None, :]

    in_feat = jax.random.normal(k_feat, (N, IN_DIM), jnp.float32)

    params = {
        "w1": _glorot(k1, (IN_DIM, HIDDEN)),
        "b1": jnp.zeros((1, HIDDEN), jnp.float32),
        "w2": _glorot(k2, (HIDDEN, HIDDEN)),
        "b2": jnp.zeros((1, HIDDEN), jnp.float32),
        "wc": _glorot(k3, (HIDDEN, N_CLASSES)),
        "bc": jax.random.uniform(k4, (1, N_CLASSES), jnp.float32, -0.1, 0.1),
    }

    logits = jax.block_until_ready(jax.jit(gcn_forward)(a_hat, in_feat, params))

    ref = _ref_forward(a_hat, in_feat, params)
    assert logits.shape == (1, N_CLASSES), logits.shape
    assert jnp.allclose(logits, ref, atol=1e-3, rtol=1e-3), (logits, ref)

    print("KERNEL_OK")
</pallas_src>

<mosaic_0001>
module attributes {stable_mosaic.version = 11 : i64} {
  func.func @_gcn_fused_kernel(%arg0: memref<16x16xf32, #tpu.memory_space<vmem>>, %arg1: memref<16x8xf32, #tpu.memory_space<vmem>>, %arg2: memref<8x128xf32, #tpu.memory_space<vmem>>, %arg3: memref<1x128xf32, #tpu.memory_space<vmem>>, %arg4: memref<128x128xf32, #tpu.memory_space<vmem>>, %arg5: memref<1x128xf32, #tpu.memory_space<vmem>>, %arg6: memref<128x128xf32, #tpu.memory_space<vmem>>, %arg7: memref<1x128xf32, #tpu.memory_space<vmem>>, %arg8: memref<1x128xf32, #tpu.memory_space<vmem>>) attributes {dimension_semantics = [], scalar_prefetch = 0 : i64, scratch_operands = 0 : i64, tpu.core_type = #tpu.core_type<tc>} {
    %c0 = arith.constant 0 : index
    %c0_0 = arith.constant 0 : index
    %0 = vector.load %arg0[%c0, %c0_0] : memref<16x16xf32, #tpu.memory_space<vmem>>, vector<16x16xf32>
    %1 = arith.truncf %0 : vector<16x16xf32> to vector<16x16xbf16>
    %c0_1 = arith.constant 0 : index
    %c0_2 = arith.constant 0 : index
    %2 = vector.load %arg1[%c0_1, %c0_2] : memref<16x8xf32, #tpu.memory_space<vmem>>, vector<16x8xf32>
    %3 = arith.truncf %2 : vector<16x8xf32> to vector<16x8xbf16>
    %c0_3 = arith.constant 0 : index
    %c0_4 = arith.constant 0 : index
    %4 = vector.load %arg2[%c0_3, %c0_4] : memref<8x128xf32, #tpu.memory_space<vmem>>, vector<8x128xf32>
    %5 = arith.truncf %4 : vector<8x128xf32> to vector<8x128xbf16>
    %cst = arith.constant dense<0.000000e+00> : vector<16x128xf32>
    %6 = tpu.matmul %3, %5, %cst {dimension_numbers = #tpu.dot_dimension_numbers<[1], [0], [0], [1], [0, 0, 1, 1], [], []>} : vector<16x8xbf16>, vector<8x128xbf16>, vector<16x128xf32> -> vector<16x128xf32>
    %7 = arith.truncf %6 : vector<16x128xf32> to vector<16x128xbf16>
    %cst_5 = arith.constant dense<0.000000e+00> : vector<16x128xf32>
    %8 = tpu.matmul %1, %7, %cst_5 {dimension_numbers = #tpu.dot_dimension_numbers<[1], [0], [0], [1], [0, 0, 1, 1], [], []>} : vector<16x16xbf16>, vector<16x128xbf16>, vector<16x128xf32> -> vector<16x128xf32>
    %c0_6 = arith.constant 0 : index
    %c0_7 = arith.constant 0 : index
    %9 = vector.load %arg3[%c0_6, %c0_7] : memref<1x128xf32, #tpu.memory_space<vmem>>, vector<1x128xf32>
    %10 = vector.broadcast %9 : vector<1x128xf32> to vector<16x128xf32>
    %11 = arith.addf %8, %10 : vector<16x128xf32>
    %cst_8 = arith.constant 0.000000e+00 : f32
    %12 = vector.broadcast %cst_8 : f32 to vector<16x128xf32>
    %13 = arith.maximumf %11, %12 : vector<16x128xf32>
    %14 = arith.truncf %13 : vector<16x128xf32> to vector<16x128xbf16>
    %c0_9 = arith.constant 0 : index
    %c0_10 = arith.constant 0 : index
    %15 = vector.load %arg4[%c0_9, %c0_10] : memref<128x128xf32, #tpu.memory_space<vmem>>, vector<128x128xf32>
    %16 = arith.truncf %15 : vector<128x128xf32> to vector<128x128xbf16>
    %cst_11 = arith.constant dense<0.000000e+00> : vector<16x128xf32>
    %17 = tpu.matmul %14, %16, %cst_11 {dimension_numbers = #tpu.dot_dimension_numbers<[1], [0], [0], [1], [0, 0, 1, 1], [], []>} : vector<16x128xbf16>, vector<128x128xbf16>, vector<16x128xf32> -> vector<16x128xf32>
    %18 = arith.truncf %17 : vector<16x128xf32> to vector<16x128xbf16>
    %cst_12 = arith.constant dense<0.000000e+00> : vector<16x128xf32>
    %19 = tpu.matmul %1, %18, %cst_12 {dimension_numbers = #tpu.dot_dimension_numbers<[1], [0], [0], [1], [0, 0, 1, 1], [], []>} : vector<16x16xbf16>, vector<16x128xbf16>, vector<16x128xf32> -> vector<16x128xf32>
    %c0_13 = arith.constant 0 : index
    %c0_14 = arith.constant 0 : index
    %20 = vector.load %arg5[%c0_13, %c0_14] : memref<1x128xf32, #tpu.memory_space<vmem>>, vector<1x128xf32>
    %21 = vector.broadcast %20 : vector<1x128xf32> to vector<16x128xf32>
    %22 = arith.addf %19, %21 : vector<16x128xf32>
    %cst_15 = arith.constant dense<0.000000e+00> : vector<128xf32>
    %23 = vector.multi_reduction <add>, %22, %cst_15 [0] : vector<16x128xf32> to vector<128xf32>
    %24 = vector.shape_cast %23 : vector<128xf32> to vector<1x128xf32>
    %cst_16 = arith.constant 6.250000e-02 : f32
    %25 = vector.broadcast %cst_16 : f32 to vector<1x128xf32>
    %26 = arith.mulf %24, %25 : vector<1x128xf32>
    %27 = arith.truncf %26 : vector<1x128xf32> to vector<1x128xbf16>
    %c0_17 = arith.constant 0 : index
    %c0_18 = arith.constant 0 : index
    %28 = vector.load %arg6[%c0_17, %c0_18] : memref<128x128xf32, #tpu.memory_space<vmem>>, vector<128x128xf32>
    %29 = arith.truncf %28 : vector<128x128xf32> to vector<128x128xbf16>
    %cst_19 = arith.constant dense<0.000000e+00> : vector<1x128xf32>
    %30 = tpu.matmul %27, %29, %cst_19 {dimension_numbers = #tpu.dot_dimension_numbers<[1], [0], [0], [1], [0, 0, 1, 1], [], []>} : vector<1x128xbf16>, vector<128x128xbf16>, vector<1x128xf32> -> vector<1x128xf32>
    %c0_20 = arith.constant 0 : index
    %c0_21 = arith.constant 0 : index
    %31 = vector.load %arg7[%c0_20, %c0_21] : memref<1x128xf32, #tpu.memory_space<vmem>>, vector<1x128xf32>
    %32 = arith.addf %30, %31 : vector<1x128xf32>
    %c0_22 = arith.constant 0 : index
    %c0_23 = arith.constant 0 : index
    %33 = vector.load %arg8[%c0_22, %c0_23] : memref<1x128xf32, #tpu.memory_space<vmem>>, vector<1x128xf32>
    tpu.vector_store %arg8[%c0_22, %c0_23], %32 {strides = array<i32>} : memref<1x128xf32, #tpu.memory_space<vmem>>, vector<1x128xf32>,
    return
  }
}

</mosaic_0001>

<llo_original>
// kernel: gcn_forward.1
$region0: #{gcn_forward.1}
  #allocation0 [shape = 'u32[]', space=smem, size = 0x4, offset = 0x4, fixed_abs, tag = 'smem constant byte address 0x4 - core index']
  #allocation1 [shape = 'u32[72,128]{1,0:T(1,128)}', space=vmem, size = 0x9000, scoped, tag = 'internal scratch']
  %s0 = inlined_call_operand.vmem [shape: f32[16,16], index: 0, kind: input, shape index: {}]
  %s1 = inlined_call_operand.vmem [shape: f32[16,8], index: 1, kind: input, shape index: {}]
  %s2 = inlined_call_operand.vmem [shape: f32[8,128], index: 2, kind: input, shape index: {}]
  %s3 = inlined_call_operand.vmem [shape: f32[1,128], index: 3, kind: input, shape index: {}]
  %s4 = inlined_call_operand.vmem [shape: f32[128,128], index: 4, kind: input, shape index: {}]
  %s5 = inlined_call_operand.vmem [shape: f32[1,128], index: 5, kind: input, shape index: {}]
  %s6 = inlined_call_operand.vmem [shape: f32[128,128], index: 6, kind: input, shape index: {}]
  %s7 = inlined_call_operand.vmem [shape: f32[1,128], index: 7, kind: input, shape index: {}]
  %s8 = inlined_call_operand.hbm [shape: f32[1,128], index: 8, kind: output, shape index: {}]
  %s9 = sld [smem:[#allocation0]]
  $region42: #{gcn_forward.1} parent=0
    _
  %s11 = ssub.s32 1, %s9
  %s12 = scalar_select 0, %s11, %s9
  $region1: #{gcn_forward.1} parent=0
    #allocation2 [shape = 'u8[512]{0}', space=vmem, size = 0x400, scoped, tag = 'output window, operand 0, single buffered']
    #allocation3 [shape = 's32[1]{0}', space=sflag, size = 0x4, scoped, tag = 'scoped memory for gcn_forward.1']
    %13 = vsyncpa [#allocation3], 0
    // Predicated region
    $region2: #{gcn_forward.1} parent=1 // pred_check
      _
    $region3: #{gcn_forward.1} parent=1 // pred_check_branch
      %15 = sbr.rel (0) target = $region5
    $region4: #{gcn_forward.1} parent=1 // pred_region
      _
    $region5: #{gcn_forward.1} parent=1 // pred_fallthru
      _
    // Predicated region
    $region6: #{gcn_forward.1} parent=1 // pred_check
      _
    $region7: #{gcn_forward.1} parent=1 // pred_check_branch
      %17 = sbr.rel (0) target = $region9
    $region8: #{gcn_forward.1} parent=1 // pred_region
      _
    $region9: #{gcn_forward.1} parent=1 // pred_fallthru
      _
    // Predicated region
    $region10: #{gcn_forward.1} parent=1 // pred_check
      _
    $region11: #{gcn_forward.1} parent=1 // pred_check_branch
      %19 = sbr.rel (0) target = $region13
    $region12: #{gcn_forward.1} parent=1 // pred_region
      _
    $region13: #{gcn_forward.1} parent=1 // pred_fallthru
      _
    // Predicated region
    $region14: #{gcn_forward.1} parent=1 // pred_check
      _
    $region15: #{gcn_forward.1} parent=1 // pred_check_branch
      %21 = sbr.rel (0) target = $region17
    $region16: #{gcn_forward.1} parent=1 // pred_region
      _
    $region17: #{gcn_forward.1} parent=1 // pred_fallthru
      _
    // Predicated region
    $region18: #{gcn_forward.1} parent=1 // pred_check
      _
    $region19: #{gcn_forward.1} parent=1 // pred_check_branch
      %23 = sbr.rel (0) target = $region21
    $region20: #{gcn_forward.1} parent=1 // pred_region
      _
    $region21: #{gcn_forward.1} parent=1 // pred_fallthru
      _
    // Predicated region
    $region22: #{gcn_forward.1} parent=1 // pred_check
      _
    $region23: #{gcn_forward.1} parent=1 // pred_check_branch
      %25 = sbr.rel (0) target = $region25
    $region24: #{gcn_forward.1} parent=1 // pred_region
      _
    $region25: #{gcn_forward.1} parent=1 // pred_fallthru
      _
    // Predicated region
    $region26: #{gcn_forward.1} parent=1 // pred_check
      _
    $region27: #{gcn_forward.1} parent=1 // pred_check_branch
      %27 = sbr.rel (0) target = $region29
    $region28: #{gcn_forward.1} parent=1 // pred_region
      _
    $region29: #{gcn_forward.1} parent=1 // pred_fallthru
      _
    // Predicated region
    $region30: #{gcn_forward.1} parent=1 // pred_check
      _
    $region31: #{gcn_forward.1} parent=1 // pred_check_branch
      %29 = sbr.rel (0) target = $region33
    $region32: #{gcn_forward.1} parent=1 // pred_region
      _
    $region33: #{gcn_forward.1} parent=1 // pred_fallthru
      _
    %v31 = vld [vmem:[%s0] sm:$0xff]
    %v32 = vld [vmem:[%s0 + $0x8] sm:$0xff]
    %v33 = vpack.c.bf16 %v32, %v31
    %v34 = vld [vmem:[%s1] sm:$0xff]
    %v35 = vld [vmem:[%s1 + $0x8] sm:$0xff]
    %v36 = vpack.c.bf16 %v35, %v34
    %v37 = vld [vmem:[%s2] sm:$0xff]
    %v38 = vpack.c.bf16 %v37, %v37
    %vm39 = vcmask 64512
    %v41 = vsel %vm39, %v36, 0
    %vm43 = vcmask 1043456
    %v45 = vsel %vm43, %v38, 0
    %47 = vmatpush.bf16.msra.mxu0 0
    %48 = vmatpush.bf16.msra.mxu0 0
    %49 = vmatpush.bf16.msra.mxu0 0
    %50 = vmatpush.bf16.msra.mxu0 0
    %51 = vmatpush.bf16.msra.mxu0 0
    %52 = vmatpush.bf16.msra.mxu0 0
    %53 = vmatpush.bf16.msra.mxu0 0
    %54 = vmatpush.bf16.msra.mxu0 %v45
    %55 = vmatmul.bf16.gmra.mxu0 %v41
    %v56 = vpop.f32.mrf.mxu0
    %v57 = vadd.f32 0.0, %v56
    %v58 = vpop.f32.mrf.mxu0
    %v59 = vadd.f32 0.0, %v58
    %60 = vdwg.mxu0
    %v61 = vpack.c.bf16 %v59, %v57
    %v62 = vld [vmem:[%s3] sm:$0x1]
    %v64 = vperm.slane %v62, 0
    %vm66 = vcmask 130048
    %v68 = vsel %vm66, %v33, 0
    %70 = vmatpush.bf16.msra.mxu0 0
    %71 = vmatpush.bf16.msra.mxu0 0
    %72 = vmatpush.bf16.msra.mxu0 0
    %73 = vmatpush.bf16.msra.mxu0 0
    %74 = vmatpush.bf16.msra.mxu0 0
    %75 = vmatpush.bf16.msra.mxu0 0
    %76 = vmatpush.bf16.msra.mxu0 0
    %77 = vmatpush.bf16.msra.mxu0 %v61
    %78 = vmatmul.bf16.gmra.mxu0 %v68
    %v79 = vpop.f32.mrf.mxu0
    %v80 = vadd.f32 %v64, %v79
    %v81 = vpop.f32.mrf.mxu0
    %v82 = vadd.f32 %v64, %v81
    %83 = vdwg.mxu0
    %v84 = vmax.f32 %v80, 0.0
    %v85 = vmax.f32 %v82, 0.0
    %v86 = vpack.c.bf16 %v85, %v84
    %v87 = vld [vmem:[%s4] sm:$0xff]
    %v88 = vld [vmem:[%s4 + $0x8] sm:$0xff]
    %v89 = vld [vmem:[%s4 + $0x10] sm:$0xff]
    %v90 = vld [vmem:[%s4 + $0x18] sm:$0xff]
    %v91 = vld [vmem:[%s4 + $0x20] sm:$0xff]
    %v92 = vld [vmem:[%s4 + $0x28] sm:$0xff]
    %v93 = vld [vmem:[%s4 + $0x30] sm:$0xff]
    %v94 = vld [vmem:[%s4 + $0x38] sm:$0xff]
    %v95 = vld [vmem:[%s4 + $0x40] sm:$0xff]
    %v96 = vld [vmem:[%s4 + $0x48] sm:$0xff]
    %v97 = vld [vmem:[%s4 + $0x50] sm:$0xff]
    %v98 = vld [vmem:[%s4 + $0x58] sm:$0xff]
    %v99 = vld [vmem:[%s4 + $0x60] sm:$0xff]
    %v100 = vld [vmem:[%s4 + $0x68] sm:$0xff]
    %v101 = vld [vmem:[%s4 + $0x70] sm:$0xff]
    %v102 = vld [vmem:[%s4 + $0x78] sm:$0xff]
    %v103 = vpack.c.bf16 %v88, %v87
    %v104 = vpack.c.bf16 %v90, %v89
    %v105 = vpack.c.bf16 %v92, %v91
    %v106 = vpack.c.bf16 %v94, %v93
    %v107 = vpack.c.bf16 %v96, %v95
    %v108 = vpack.c.bf16 %v98, %v97
    %v109 = vpack.c.bf16 %v100, %v99
    %v110 = vpack.c.bf16 %v102, %v101
    %111 = vmatpush.bf16.msra.mxu0 %v110
    %112 = vmatpush.bf16.msra.mxu0 %v109
    %113 = vmatpush.bf16.msra.mxu0 %v108
    %114 = vmatpush.bf16.msra.mxu0 %v107
    %115 = vmatpush.bf16.msra.mxu0 %v106
    %116 = vmatpush.bf16.msra.mxu0 %v105
    %117 = vmatpush.bf16.msra.mxu0 %v104
    %118 = vmatpush.bf16.msra.mxu0 %v103
    %119 = vmatmul.bf16.gmra.mxu0 %v86
    %v120 = vpop.f32.mrf.mxu0
    %v121 = vadd.f32 0.0, %v120
    %v122 = vpop.f32.mrf.mxu0
    %v123 = vadd.f32 0.0, %v122
    %124 = vdwg.mxu0
    %v125 = vpack.c.bf16 %v123, %v121
    %v126 = vld [vmem:[%s5] sm:$0x1]
    %v128 = vperm.slane %v126, 0
    %130 = vmatpush.bf16.msra.mxu0 0
    %131 = vmatpush.bf16.msra.mxu0 0
    %132 = vmatpush.bf16.msra.mxu0 0
    %133 = vmatpush.bf16.msra.mxu0 0
    %134 = vmatpush.bf16.msra.mxu0 0
    %135 = vmatpush.bf16.msra.mxu0 0
    %136 = vmatpush.bf16.msra.mxu0 0
    %137 = vmatpush.bf16.msra.mxu0 %v125
    %138 = vmatmul.bf16.gmra.mxu0 %v68
    %v139 = vpop.f32.mrf.mxu0
    %v140 = vadd.f32 %v128, %v139
    %v141 = vpop.f32.mrf.mxu0
    %v142 = vadd.f32 %v128, %v141
    %143 = vdwg.mxu0
    %v144 = vadd.f32 %v140, %v142
    %v145 = vrot.slane %v144, 4
    %v146 = vadd.f32 %v144, %v145
    %v147 = vrot.slane %v146, 2
    %v148 = vadd.f32 %v146, %v147
    %v149 = vrot.slane %v148, 1
    %v150 = vadd.f32 %v148, %v149
    %v151 = vmul.f32 %v150, 0.0625
    %v152 = vpack.c.bf16 %v151, %v151
    %v153 = vld [vmem:[%s6] sm:$0xff]
    %v154 = vld [vmem:[%s6 + $0x8] sm:$0xff]
    %v155 = vld [vmem:[%s6 + $0x10] sm:$0xff]
    %v156 = vld [vmem:[%s6 + $0x18] sm:$0xff]
    %v157 = vld [vmem:[%s6 + $0x20] sm:$0xff]
    %v158 = vld [vmem:[%s6 + $0x28] sm:$0xff]
    %v159 = vld [vmem:[%s6 + $0x30] sm:$0xff]
    %v160 = vld [vmem:[%s6 + $0x38] sm:$0xff]
    %v161 = vld [vmem:[%s6 + $0x40] sm:$0xff]
    %v162 = vld [vmem:[%s6 + $0x48] sm:$0xff]
    %v163 = vld [vmem:[%s6 + $0x50] sm:$0xff]
    %v164 = vld [vmem:[%s6 + $0x58] sm:$0xff]
    %v165 = vld [vmem:[%s6 + $0x60] sm:$0xff]
    %v166 = vld [vmem:[%s6 + $0x68] sm:$0xff]
    %v167 = vld [vmem:[%s6 + $0x70] sm:$0xff]
    %v168 = vld [vmem:[%s6 + $0x78] sm:$0xff]
    %v169 = vpack.c.bf16 %v154, %v153
    %v170 = vpack.c.bf16 %v156, %v155
    %v171 = vpack.c.bf16 %v158, %v157
    %v172 = vpack.c.bf16 %v160, %v159
    %v173 = vpack.c.bf16 %v162, %v161
    %v174 = vpack.c.bf16 %v164, %v163
    %v175 = vpack.c.bf16 %v166, %v165
    %v176 = vpack.c.bf16 %v168, %v167
    %v177 = vld [vmem:[%s7] sm:$0x1]
    %178 = vmatpush.bf16.msra.mxu0 %v176
    %179 = vmatpush.bf16.msra.mxu0 %v175
    %180 = vmatpush.bf16.msra.mxu0 %v174
    %181 = vmatpush.bf16.msra.mxu0 %v173
    %182 = vmatpush.bf16.msra.mxu0 %v172
    %183 = vmatpush.bf16.msra.mxu0 %v171
    %184 = vmatpush.bf16.msra.mxu0 %v170
    %185 = vmatpush.bf16.msra.mxu0 %v169
    %186 = vmatmul.bf16.gmra.mxu0 %v152
    %v187 = vpop.f32.mrf.mxu0
    %v188 = vadd.f32 %v177, %v187
    %v189 = vpop.f32.mrf.mxu0
    %190 = vdwg.mxu0
    %191 = vst [vmem:[#allocation2] sm:$0x1] %v188
    // Predicated region
    $region34: #{gcn_forward.1} parent=1 // pred_check
      _
    $region35: #{gcn_forward.1} parent=1 // pred_check_branch
      %193 = sbr.rel (0) target = $region37
    $region36: #{gcn_forward.1} parent=1 // pred_region
      %195 = vsyncadd [#allocation3], 0
      %s197 = sshll.u32 [#allocation2], 4
      %s198 = int_to_ptr.vmem [resolvable:$true] %s197
      %s199 = sshll.u32 %s8, 4
      %s200 = int_to_ptr.hbm [resolvable:$true] %s199
      %202 = dma.vmem_to_hbm [thread:$0]  %s198, 16, %s200, [#allocation3]
    $region37: #{gcn_forward.1} parent=1 // pred_fallthru
      _
    // Predicated region
    $region38: #{gcn_forward.1} parent=1 // pred_check
      _
    $region39: #{gcn_forward.1} parent=1 // pred_check_branch
      %204 = sbr.rel (0) target = $region41
    $region40: #{gcn_forward.1} parent=1 // pred_region
      %206 = dma.done [#allocation3], 16
    $region41: #{gcn_forward.1} parent=1 // pred_fallthru
      _
    %207 = vsyncpa [#allocation3], 1

</llo_original>
